<compile_context>
chip_gen: v5e
topology: v5e:2x2
jax: 0.10.0
libtpu: 0.0.40
codegen_flags: <defaults>
</compile_context>

<pallas_src>
import math

import jax
import jax.numpy as jnp
from jax.experimental import pallas as pl
from jax.experimental.pallas import tpu as pltpu


def _round_up(x, m):
    return (x + m - 1) // m * m


def _cdiv(a, b):
    return -(-a // b)


def _vmem_capacity_bytes():
    """Per-TensorCore VMEM capacity; conservative (v7x) fallback if unknown."""
    try:
        info = pltpu.get_tpu_info()
        cap = getattr(info, "vmem_capacity_bytes", None)
        if cap:
            return int(cap)
    except Exception:
        pass
    return 64 << 20


def _vmem_block_bytes(tb, Lp, Dp, DAp, h_itemsize):
    """Rough VMEM footprint for one grid step (double-buffered I/O + temps)."""
    lane, f32 = 128, 4
    h_blk = tb * Lp * Dp * h_itemsize          # (TB, Lp, Dp)
    bias_blk = tb * Lp * lane * f32            # (TB, Lp, 1) pads to 128 lanes
    a_blk = Dp * DAp * h_itemsize              # grid-invariant but still
    b_blk = DAp * lane * f32                   # double-buffered by the pipeline
    out_blk = tb * 8 * Dp * f32                # (TB, 1, Dp) pads to 8 sublanes
    attn_blk = tb * Lp * lane * f32            # (TB, Lp, 1)
    dma = 2 * (h_blk + bias_blk + a_blk + b_blk + out_blk + attn_blk)
    temps = tb * Lp * (DAp + Dp + 2 * lane) * f32   # t, attn*h product, e/p cols
    return dma + temps


def _choose_tb(B, Lp, Dp, DAp, h_itemsize, budget_bytes):
    target_rows = 256                       # keep the MXU M dimension well fed
    tb = max(1, min(B, _cdiv(target_rows, Lp)))
    if B >= 2:                              # keep >= 2 grid steps (v7x megacore)
        tb = min(tb, _cdiv(B, 2))
    while tb > 1 and _vmem_block_bytes(tb, Lp, Dp, DAp, h_itemsize) > budget_bytes:
        tb -= 1
    return tb


def attn_kernel(h_ref, bias_ref, a_ref, b_ref, out_ref, attn_ref):
    """One block of TB batch elements per grid step.

    h_ref    : (TB, Lp, Dp)  features (native/compute dtype, no in-kernel upcast)
    bias_ref : (TB, Lp, 1)   f32: 1e-30*mask on valid rows, -1e30 on padded rows
    a_ref    : (Dp, DAp)     projection matrix (compute dtype)
    b_ref    : (DAp, 1)      scoring column (f32)
    out_ref  : (TB, 1, Dp)
    attn_ref : (TB, Lp, 1)
    """
    TB, Lp, Dp = h_ref.shape
    hp = jax.lax.Precision.HIGHEST

    h3 = h_ref[...]                                      # native dtype
    h2 = h3.reshape(TB * Lp, Dp)                         # free: Lp is a sublane multiple

    # e = tanh(h @ a) @ b : both contractions on the MXU, f32 accumulation.
    t = jnp.tanh(jnp.dot(h2, a_ref[...], precision=hp,
                         preferred_element_type=jnp.float32))     # (TB*Lp, DAp)
    e = jnp.dot(t, b_ref[...], precision=hp,
                preferred_element_type=jnp.float32)               # (TB*Lp, 1)
    logits = e.reshape(TB, Lp, 1) + bias_ref[...]                 # (TB, Lp, 1)

    # Numerically-stable softmax over the sequence (sublane) axis per element.
    m = jnp.max(logits, axis=1, keepdims=True)                    # (TB, 1, 1)
    p = jnp.exp(logits - m)
    denom = jnp.sum(p, axis=1, keepdims=True)                     # (TB, 1, 1)
    attn = p * pl.reciprocal(denom, approx=False)                 # (TB, Lp, 1)

    # out = attention^T @ h : lane-broadcast multiply + sublane-tree reduction.
    # (After batch-blocking this is a batched mat-vec with M=1 per element,
    #  which the MXU handles poorly; the cross-vreg part of the reduction is
    #  plain VPU adds, so it is not the bottleneck of this mem-bound kernel.)
    out = jnp.sum(attn * h3, axis=1, keepdims=True)               # (TB, 1, Dp)

    out_ref[...] = out.astype(out_ref.dtype)
    attn_ref[...] = attn.astype(attn_ref.dtype)


def self_attention_batch(h, mask, a, b, *, compute_dtype=None):
    """h: (B, L, dim); mask: (B, L); a: (dim, da); b: (da, 1).

    Returns (out (B, dim), attention (B, L, 1)) matching the PyTorch module.
    `compute_dtype=jnp.bfloat16` halves the dominant h DMA stream (recommended
    on v5e/v6e when reduced precision is acceptable).
    """
    B, L, dim = h.shape
    da = a.shape[1]
    assert a.shape == (dim, da)
    assert b.shape == (da, 1)
    assert mask.shape == (B, L)

    cdt = jnp.dtype(compute_dtype) if compute_dtype is not None else jnp.dtype(h.dtype)
    itemsize = cdt.itemsize
    sub = 8 if itemsize >= 4 else 16         # sublane tile: f32 -> 8, bf16 -> 16

    # Lane-dense padding: feature dims -> x128, sequence -> sublane multiple.
    Dp = _round_up(dim, 128)
    DAp = _round_up(da, 128)
    Lp = _round_up(L, sub)

    cap = _vmem_capacity_bytes()
    budget = max(min(int(0.55 * cap), 100 << 20), 24 << 20)
    TB = _choose_tb(B, Lp, Dp, DAp, itemsize, budget)
    n_blocks = _cdiv(B, TB)
    Bp = n_blocks * TB

    h_p = jnp.pad(h, ((0, Bp - B), (0, Lp - L), (0, Dp - dim))).astype(cdt)
    a_p = jnp.pad(a, ((0, Dp - dim), (0, DAp - da))).astype(cdt)
    b_col = jnp.pad(b, ((0, DAp - da), (0, 0))).astype(jnp.float32)   # (DAp, 1)

    # Spec: additive term is 1e-30 * mask.  Padded sequence rows get -1e30 so
    # they vanish from the softmax; padded batch rows keep a finite bias so the
    # softmax stays NaN-free (they are dropped in the wrapper).
    bias = 1e-30 * jnp.pad(mask.astype(jnp.float32), ((0, Bp - B), (0, 0)))
    bias = jnp.pad(bias, ((0, 0), (0, Lp - L)), constant_values=-1e30)
    bias = bias[..., None]                                            # (Bp, Lp, 1)

    est = _vmem_block_bytes(TB, Lp, Dp, DAp, itemsize)
    vmem_limit = int(min(max(3 * est, 24 << 20), budget))

    cost = pl.CostEstimate(
        flops=int(2 * Bp * Lp * Dp * DAp + 2 * Bp * Lp * DAp
                  + 2 * Bp * Lp * Dp + 6 * Bp * Lp),
        transcendentals=int(Bp * Lp * (DAp + 1)),
        bytes_accessed=int(itemsize * (Bp * Lp * Dp + Dp * DAp)
                           + 4 * (Bp * Lp + DAp + Bp * Dp + Bp * Lp)),
    )

    out_p, attn_p = pl.pallas_call(
        attn_kernel,
        out_shape=(
            jax.ShapeDtypeStruct((Bp, 1, Dp), h.dtype),
            jax.ShapeDtypeStruct((Bp, Lp, 1), jnp.float32),
        ),
        grid_spec=pltpu.PrefetchScalarGridSpec(
            num_scalar_prefetch=0,
            grid=(n_blocks,),
            in_specs=[
                pl.BlockSpec((TB, Lp, Dp), lambda i: (i, 0, 0)),   # h block
                pl.BlockSpec((TB, Lp, 1), lambda i: (i, 0, 0)),    # mask bias
                pl.BlockSpec((Dp, DAp), lambda i: (0, 0)),         # a (resident)
                pl.BlockSpec((DAp, 1), lambda i: (0, 0)),          # b (resident)
            ],
            out_specs=[
                pl.BlockSpec((TB, 1, Dp), lambda i: (i, 0, 0)),    # out
                pl.BlockSpec((TB, Lp, 1), lambda i: (i, 0, 0)),    # attention
            ],
        ),
        compiler_params=pltpu.CompilerParams(
            dimension_semantics=("parallel",),   # batch blocks -> both TCs on v7x
            vmem_limit_bytes=vmem_limit,
        ),
        cost_estimate=cost,
    )(h_p, bias, a_p, b_col)

    out = out_p[:B, 0, :dim]
    attn = attn_p[:B, :L, :]
    return out, attn


def init_params(key, dim, da, dtype=jnp.float32):
    """xavier_uniform_ with gain=1.414, matching the PyTorch module."""
    ka, kb = jax.random.split(key)
    gain = 1.414
    bound_a = gain * math.sqrt(6.0 / (dim + da))
    bound_b = gain * math.sqrt(6.0 / (da + 1))
    a = jax.random.uniform(ka, (dim, da), dtype, -bound_a, bound_a)
    b = jax.random.uniform(kb, (da, 1), dtype, -bound_b, bound_b)
    return a, b


if __name__ == "__main__":
    key = jax.random.PRNGKey(0)
    kh, km, kp = jax.random.split(key, 3)

    # Small shapes; deliberately unaligned so padding + batch-blocking paths
    # (TB=2, two grid steps) are exercised.
    B, L, DIM, DA = 4, 12, 96, 64

    h = jax.random.normal(kh, (B, L, DIM), jnp.float32)
    mask = (jax.random.uniform(km, (B, L)) > 0.5).astype(jnp.float32)
    a, b = init_params(kp, DIM, DA)

    out, attn = self_attention_batch(h, mask, a, b)
    out, attn = jax.block_until_ready((out, attn))

    # Pure-JAX reference (full f32 matmul precision).
    hp = jax.lax.Precision.HIGHEST
    e = jnp.matmul(jnp.tanh(jnp.matmul(h, a, precision=hp)), b, precision=hp)
    logits = e + (1e-30 * mask)[..., None]
    attn_ref = jax.nn.softmax(logits, axis=1)
    out_ref = jnp.squeeze(
        jnp.matmul(jnp.swapaxes(attn_ref, 1, 2), h, precision=hp), axis=1)

    assert out.shape == (B, DIM)
    assert attn.shape == (B, L, 1)
    assert jnp.allclose(attn, attn_ref, atol=5e-4, rtol=5e-4), "attention mismatch"
    assert jnp.allclose(out, out_ref, atol=5e-4, rtol=5e-4), "output mismatch"

    print("KERNEL_OK")
</pallas_src>

<mosaic_0001>
module attributes {stable_mosaic.version = 11 : i64} {
  func.func @attn_kernel(%arg0: i32, %arg1: memref<2x16x128xf32, #tpu.memory_space<vmem>>, %arg2: memref<2x16x1xf32, #tpu.memory_space<vmem>>, %arg3: memref<128x128xf32, #tpu.memory_space<vmem>>, %arg4: memref<128x1xf32, #tpu.memory_space<vmem>>, %arg5: memref<2x1x128xf32, #tpu.memory_space<vmem>>, %arg6: memref<2x16x1xf32, #tpu.memory_space<vmem>>) attributes {dimension_semantics = [#tpu.dimension_semantics<parallel>], iteration_bounds = array<i64: 2>, scalar_prefetch = 0 : i64, scratch_operands = 0 : i64, tpu.core_type = #tpu.core_type<tc>, window_params = [{transform_indices = @transform_0, window_bounds = array<i64: 2, 16, 128>}, {transform_indices = @transform_1, window_bounds = array<i64: 2, 16, 1>}, {pipeline_mode = #tpu.pipeline_mode<synchronous>, transform_indices = @transform_2, window_bounds = array<i64: 128, 128>}, {pipeline_mode = #tpu.pipeline_mode<synchronous>, transform_indices = @transform_3, window_bounds = array<i64: 128, 1>}, {transform_indices = @transform_4, window_bounds = array<i64: 2, 1, 128>}, {transform_indices = @transform_5, window_bounds = array<i64: 2, 16, 1>}]} {
    %c0 = arith.constant 0 : index
    %c0_0 = arith.constant 0 : index
    %c0_1 = arith.constant 0 : index
    %0 = vector.load %arg1[%c0, %c0_0, %c0_1] : memref<2x16x128xf32, #tpu.memory_space<vmem>>, vector<2x16x128xf32>
    %1 = vector.shape_cast %0 : vector<2x16x128xf32> to vector<32x128xf32>
    %c0_2 = arith.constant 0 : index
    %c0_3 = arith.constant 0 : index
    %2 = vector.load %arg3[%c0_2, %c0_3] : memref<128x128xf32, #tpu.memory_space<vmem>>, vector<128x128xf32>
    %cst = arith.constant dense<0.000000e+00> : vector<32x128xf32>
    %3 = tpu.matmul %1, %2, %cst {dimension_numbers = #tpu.dot_dimension_numbers<[1], [0], [0], [1], [0, 0, 1, 1], [], []>, precision = #tpu.contract_precision<fp32>} : vector<32x128xf32>, vector<128x128xf32>, vector<32x128xf32> -> vector<32x128xf32>
    %4 = math.tanh %3 : vector<32x128xf32>
    %c0_4 = arith.constant 0 : index
    %c0_5 = arith.constant 0 : index
    %5 = vector.load %arg4[%c0_4, %c0_5] : memref<128x1xf32, #tpu.memory_space<vmem>>, vector<128x1xf32>
    %cst_6 = arith.constant dense<0.000000e+00> : vector<32x1xf32>
    %6 = tpu.matmul %4, %5, %cst_6 {dimension_numbers = #tpu.dot_dimension_numbers<[1], [0], [0], [1], [0, 0, 1, 1], [], []>, precision = #tpu.contract_precision<fp32>} : vector<32x128xf32>, vector<128x1xf32>, vector<32x1xf32> -> vector<32x1xf32>
    %7 = vector.shape_cast %6 : vector<32x1xf32> to vector<2x16x1xf32>
    %c0_7 = arith.constant 0 : index
    %c0_8 = arith.constant 0 : index
    %c0_9 = arith.constant 0 : index
    %8 = vector.load %arg2[%c0_7, %c0_8, %c0_9] : memref<2x16x1xf32, #tpu.memory_space<vmem>>, vector<2x16x1xf32>
    %9 = arith.addf %7, %8 : vector<2x16x1xf32>
    %cst_10 = arith.constant dense<0xFF800000> : vector<2x1xf32>
    %10 = vector.multi_reduction <maximumf>, %9, %cst_10 [1] : vector<2x16x1xf32> to vector<2x1xf32>
    %11 = vector.shape_cast %10 : vector<2x1xf32> to vector<2x1x1xf32>
    %12 = vector.broadcast %11 : vector<2x1x1xf32> to vector<2x16x1xf32>
    %13 = arith.subf %9, %12 : vector<2x16x1xf32>
    %14 = math.exp %13 : vector<2x16x1xf32>
    %cst_11 = arith.constant dense<0.000000e+00> : vector<2x1xf32>
    %15 = vector.multi_reduction <add>, %14, %cst_11 [1] : vector<2x16x1xf32> to vector<2x1xf32>
    %16 = vector.shape_cast %15 : vector<2x1xf32> to vector<2x1x1xf32>
    %17 = tpu.reciprocal %16 : vector<2x1x1xf32> -> vector<2x1x1xf32>
    %18 = vector.broadcast %17 : vector<2x1x1xf32> to vector<2x16x1xf32>
    %19 = arith.mulf %14, %18 : vector<2x16x1xf32>
    %20 = vector.broadcast %19 : vector<2x16x1xf32> to vector<2x16x128xf32>
    %21 = arith.mulf %20, %0 : vector<2x16x128xf32>
    %cst_12 = arith.constant dense<0.000000e+00> : vector<2x128xf32>
    %22 = vector.multi_reduction <add>, %21, %cst_12 [1] : vector<2x16x128xf32> to vector<2x128xf32>
    %23 = vector.shape_cast %22 : vector<2x128xf32> to vector<2x1x128xf32>
    %c0_13 = arith.constant 0 : index
    %c0_14 = arith.constant 0 : index
    %c0_15 = arith.constant 0 : index
    %24 = vector.load %arg5[%c0_13, %c0_14, %c0_15] : memref<2x1x128xf32, #tpu.memory_space<vmem>>, vector<2x1x128xf32>
    tpu.vector_store %arg5[%c0_13, %c0_14, %c0_15], %23 {strides = array<i32>} : memref<2x1x128xf32, #tpu.memory_space<vmem>>, vector<2x1x128xf32>,
    %c0_16 = arith.constant 0 : index
    %c0_17 = arith.constant 0 : index
    %c0_18 = arith.constant 0 : index
    %25 = vector.load %arg6[%c0_16, %c0_17, %c0_18] : memref<2x16x1xf32, #tpu.memory_space<vmem>>, vector<2x16x1xf32>
    tpu.vector_store %arg6[%c0_16, %c0_17, %c0_18], %19 {strides = array<i32>} : memref<2x16x1xf32, #tpu.memory_space<vmem>>, vector<2x16x1xf32>,
    return
  }
  func.func @transform_0(%arg0: i32) -> (i32, i32, i32) {
    %c0_i32 = arith.constant 0 : i32
    %c0_i32_0 = arith.constant 0 : i32
    %c0_i32_1 = arith.constant 0 : i32
    return %arg0, %c0_i32, %c0_i32_0 : i32, i32, i32
  }
  func.func @transform_1(%arg0: i32) -> (i32, i32, i32) {
    %c0_i32 = arith.constant 0 : i32
    %c0_i32_0 = arith.constant 0 : i32
    %c0_i32_1 = arith.constant 0 : i32
    return %arg0, %c0_i32, %c0_i32_0 : i32, i32, i32
  }
  func.func @transform_2(%arg0: i32) -> (i32, i32) {
    %c0_i32 = arith.constant 0 : i32
    %c0_i32_0 = arith.constant 0 : i32
    %c0_i32_1 = arith.constant 0 : i32
    return %c0_i32, %c0_i32_0 : i32, i32
  }
  func.func @transform_3(%arg0: i32) -> (i32, i32) {
    %c0_i32 = arith.constant 0 : i32
    %c0_i32_0 = arith.constant 0 : i32
    %c0_i32_1 = arith.constant 0 : i32
    return %c0_i32, %c0_i32_0 : i32, i32
  }
  func.func @transform_4(%arg0: i32) -> (i32, i32, i32) {
    %c0_i32 = arith.constant 0 : i32
    %c0_i32_0 = arith.constant 0 : i32
    %c0_i32_1 = arith.constant 0 : i32
    return %arg0, %c0_i32, %c0_i32_0 : i32, i32, i32
  }
  func.func @transform_5(%arg0: i32) -> (i32, i32, i32) {
    %c0_i32 = arith.constant 0 : i32
    %c0_i32_0 = arith.constant 0 : i32
    %c0_i32_1 = arith.constant 0 : i32
    return %arg0, %c0_i32, %c0_i32_0 : i32, i32, i32
  }
}

</mosaic_0001>

<llo_original>
// kernel: tpu_custom_call.1
$region0: #{tpu_custom_call.1}
  #allocation0 [shape = 'u32[]', space=smem, size = 0x4, offset = 0x4, fixed_abs, tag = 'smem constant byte address 0x4 - core index']
  #allocation1 [shape = 'u32[72,128]{1,0:T(1,128)}', space=vmem, size = 0x9000, scoped, tag = 'internal scratch']
  %s0 = inlined_call_operand.vmem [shape: f32[4,16,128], index: 0, kind: input, shape index: {}]
  %s1 = inlined_call_operand.vmem [shape: f32[4,16,1], index: 1, kind: input, shape index: {}]
  %s2 = inlined_call_operand.vmem [shape: f32[128,128], index: 2, kind: input, shape index: {}]
  %s3 = inlined_call_operand.vmem [shape: f32[128,1], index: 3, kind: input, shape index: {}]
  %s4 = inlined_call_operand.hbm [shape: f32[4,1,128], index: 4, kind: output, shape index: {0}]
  %s5 = inlined_call_operand.vmem [shape: f32[4,16,1], index: 5, kind: output, shape index: {1}]
  %6 = xla_tuple %s4, %s5
  %s7 = sld [smem:[#allocation0]]
  $region57: #{tpu_custom_call.1} parent=0
    _
  %s9 = ssub.s32 1, %s7
  %s10 = scalar_select 0, %s9, %s7
  $region1: #{tpu_custom_call.1} parent=0
    #allocation2 [shape = 'u8[2048]{0}', space=vmem, size = 0x800, scoped, tag = 'output window, operand 0']
    #allocation3 [shape = 's32[2]{0}', space=sflag, size = 0x8, scoped, tag = 'scoped memory for tpu_custom_call.1']
    %11 = vsyncpa [#allocation3], 0
    %s12 = scalar_lea.sflag [#allocation3], 1
    %13 = vsyncpa %s12, 0
    loop: start=0, step=1, limit=4
    $region2: #{tpu_custom_call.1} parent=1 // loop_pre_header
      _
    $region3: #{tpu_custom_call.1} parent=1 // loop_header
      %s15 = sphi 0, %s19
      %p16 = scmp.ge.s32.totalorder %s15, 4
      %s25 = sphi 0, %s27
      %s28 = sphi 0, %s25
      %s29 = sphi 0, %s28
      %s45 = sphi 0, %s29
      %s51 = sphi 0, %s53
      %s54 = sphi 0, %s51
      %s55 = sphi 0, %s54
      %s71 = sphi 0, %s55
      %s75 = sphi 0, %s75
      %s77 = sphi 0, %s75
      %s78 = sphi 0, %s77
      %s92 = sphi 0, %s78
      %s96 = sphi 0, %s96
      %s98 = sphi 0, %s96
      %s99 = sphi 0, %s98
      %s113 = sphi 0, %s99
      %s119 = sphi 0, %s121
      %s122 = sphi 0, %s119
      %s123 = sphi 0, %s122
      %s139 = sphi 0, %s123
      %s145 = sphi 0, %s147
      %s148 = sphi 0, %s145
      %s149 = sphi 0, %s148
      %s165 = sphi 0, %s149
    $region4: #{tpu_custom_call.1} parent=1 // loop_header_branch
      %18 = sbr.rel (%p16) target = $region8
    $region5: #{tpu_custom_call.1} parent=1 // loop_body
      %s20 = ssub.s32 %s15, 1
      %s21 = ssub.s32 %s15, 2
      %s22 = sadd.s32 %s15, 1
      %s23 = ssub.s32 %s15, %s22
      %p24 = scmp.eq.s32.totalorder %s23, 0
      %s26 = sadd.s32 %s25, 1
      %s27 = scalar_select %p24, %s25, %s26
      %p30 = pneg %p24
      %p31 = scmp.eq.s32.totalorder %s15, 1
      %p32 = por %p30, %p31
      %p33 = scmp.ne.s32.totalorder %s25, %s28
      %p34 = scmp.eq.s32.totalorder %s15, 0
      %p35 = por %p33, %p34
      %p36 = scmp.ne.s32.totalorder %s25, %s28
      %p37 = scmp.eq.s32.totalorder %s20, 1
      %p38 = por %p36, %p37
      %p39 = scmp.ne.s32.totalorder %s28, %s29
      %p40 = scmp.eq.s32.totalorder %s20, 0
      %p41 = por %p39, %p40
      %p42 = scmp.ne.s32.totalorder %s28, %s29
      %p43 = scmp.eq.s32.totalorder %s21, 1
      %p44 = por %p42, %p43
      %p46 = scmp.ne.s32.totalorder %s29, %s45
      %p47 = scmp.eq.s32.totalorder %s21, 0
      %p48 = por %p46, %p47
      %s49 = ssub.s32 %s15, %s22
      %p50 = scmp.eq.s32.totalorder %s49, 0
      %s52 = sadd.s32 %s51, 1
      %s53 = scalar_select %p50, %s51, %s52
      %p56 = pneg %p50
      %p57 = scmp.eq.s32.totalorder %s15, 1
      %p58 = por %p56, %p57
      %p59 = scmp.ne.s32.totalorder %s51, %s54
      %p60 = scmp.eq.s32.totalorder %s15, 0
      %p61 = por %p59, %p60
      %p62 = scmp.ne.s32.totalorder %s51, %s54
      %p63 = scmp.eq.s32.totalorder %s20, 1
      %p64 = por %p62, %p63
      %p65 = scmp.ne.s32.totalorder %s54, %s55
      %p66 = scmp.eq.s32.totalorder %s20, 0
      %p67 = por %p65, %p66
      %p68 = scmp.ne.s32.totalorder %s54, %s55
      %p69 = scmp.eq.s32.totalorder %s21, 1
      %p70 = por %p68, %p69
      %p72 = scmp.ne.s32.totalorder %s55, %s71
      %p73 = scmp.eq.s32.totalorder %s21, 0
      %p74 = por %p72, %p73
      %s76 = sadd.s32 %s75, 1
      %p79 = scmp.eq.s32.totalorder %s15, 1
      %p80 = scmp.ne.s32.totalorder %s75, %s77
      %p81 = scmp.eq.s32.totalorder %s15, 0
      %p82 = por %p80, %p81
      %p83 = scmp.ne.s32.totalorder %s75, %s77
      %p84 = scmp.eq.s32.totalorder %s20, 1
      %p85 = por %p83, %p84
      %p86 = scmp.ne.s32.totalorder %s77, %s78
      %p87 = scmp.eq.s32.totalorder %s20, 0
      %p88 = por %p86, %p87
      %p89 = scmp.ne.s32.totalorder %s77, %s78
      %p90 = scmp.eq.s32.totalorder %s21, 1
      %p91 = por %p89, %p90
      %p93 = scmp.ne.s32.totalorder %s78, %s92
      %p94 = scmp.eq.s32.totalorder %s21, 0
      %p95 = por %p93, %p94
      %s97 = sadd.s32 %s96, 1
      %p100 = scmp.eq.s32.totalorder %s15, 1
      %p101 = scmp.ne.s32.totalorder %s96, %s98
      %p102 = scmp.eq.s32.totalorder %s15, 0
      %p103 = por %p101, %p102
      %p104 = scmp.ne.s32.totalorder %s96, %s98
      %p105 = scmp.eq.s32.totalorder %s20, 1
      %p106 = por %p104, %p105
      %p107 = scmp.ne.s32.totalorder %s98, %s99
      %p108 = scmp.eq.s32.totalorder %s20, 0
      %p109 = por %p107, %p108
      %p110 = scmp.ne.s32.totalorder %s98, %s99
      %p111 = scmp.eq.s32.totalorder %s21, 1
      %p112 = por %p110, %p111
      %p114 = scmp.ne.s32.totalorder %s99, %s113
      %p115 = scmp.eq.s32.totalorder %s21, 0
      %p116 = por %p114, %p115
      %s117 = ssub.s32 %s15, %s22
      %p118 = scmp.eq.s32.totalorder %s117, 0
      %s120 = sadd.s32 %s119, 1
      %s121 = scalar_select %p118, %s119, %s120
      %p124 = pneg %p118
      %p125 = scmp.eq.s32.totalorder %s15, 1
      %p126 = por %p124, %p125
      %p127 = scmp.ne.s32.totalorder %s119, %s122
      %p128 = scmp.eq.s32.totalorder %s15, 0
      %p129 = por %p127, %p128
      %p130 = scmp.ne.s32.totalorder %s119, %s122
      %p131 = scmp.eq.s32.totalorder %s20, 1
      %p132 = por %p130, %p131
      %p133 = scmp.ne.s32.totalorder %s122, %s123
      %p134 = scmp.eq.s32.totalorder %s20, 0
      %p135 = por %p133, %p134
      %p136 = scmp.ne.s32.totalorder %s122, %s123
      %p137 = scmp.eq.s32.totalorder %s21, 1
      %p138 = por %p136, %p137
      %p140 = scmp.ne.s32.totalorder %s123, %s139
      %p141 = scmp.eq.s32.totalorder %s21, 0
      %p142 = por %p140, %p141
      %s143 = ssub.s32 %s15, %s22
      %p144 = scmp.eq.s32.totalorder %s143, 0
      %s146 = sadd.s32 %s145, 1
      %s147 = scalar_select %p144, %s145, %s146
      %p150 = pneg %p144
      %p151 = scmp.eq.s32.totalorder %s15, 1
      %p152 = por %p150, %p151
      %p153 = scmp.ne.s32.totalorder %s145, %s148
      %p154 = scmp.eq.s32.totalorder %s15, 0
      %p155 = por %p153, %p154
      %p156 = scmp.ne.s32.totalorder %s145, %s148
      %p157 = scmp.eq.s32.totalorder %s20, 1
      %p158 = por %p156, %p157
      %p159 = scmp.ne.s32.totalorder %s148, %s149
      %p160 = scmp.eq.s32.totalorder %s20, 0
      %p161 = por %p159, %p160
      %p162 = scmp.ne.s32.totalorder %s148, %s149
      %p163 = scmp.eq.s32.totalorder %s21, 1
      %p164 = por %p162, %p163
      %p166 = scmp.ne.s32.totalorder %s149, %s165
      %p167 = scmp.eq.s32.totalorder %s21, 0
      %p168 = por %p166, %p167
      %p169 = scmp.le.s32.totalorder 1, %s15
      %p170 = scmp.lt.s32.totalorder %s15, 3
      %p171 = pnand %p169, %p170
      %p172 = pneg %p171
      // Predicated region
      $region9: #{tpu_custom_call.1} parent=5 // pred_check
        _
      $region10: #{tpu_custom_call.1} parent=5 // pred_check_branch
        %174 = sbr.rel (%p171) target = $region12
      $region11: #{tpu_custom_call.1} parent=5 // pred_region
        %s175 = ssub.s32 %s15, 1
        // Predicated region
        $region13: #{tpu_custom_call.1} parent=11 // pred_check
          %p176 = pneg %p88
        $region14: #{tpu_custom_call.1} parent=11 // pred_check_branch
          %178 = sbr.rel (%p176) target = $region16
        $region15: #{tpu_custom_call.1} parent=11 // pred_region
          _
        $region16: #{tpu_custom_call.1} parent=11 // pred_fallthru
          _
        // Predicated region
        $region17: #{tpu_custom_call.1} parent=11 // pred_check
          %p179 = pneg %p109
        $region18: #{tpu_custom_call.1} parent=11 // pred_check_branch
          %181 = sbr.rel (%p179) target = $region20
        $region19: #{tpu_custom_call.1} parent=11 // pred_region
          _
        $region20: #{tpu_custom_call.1} parent=11 // pred_fallthru
          _
      $region12: #{tpu_custom_call.1} parent=5 // pred_fallthru
        _
      %p182 = scmp.lt.s32.totalorder %s15, 2
      // Predicated region
      $region21: #{tpu_custom_call.1} parent=5 // pred_check
        %p183 = pneg %p182
      $region22: #{tpu_custom_call.1} parent=5 // pred_check_branch
        %185 = sbr.rel (%p183) target = $region24
      $region23: #{tpu_custom_call.1} parent=5 // pred_region
        // Predicated region
        $region25: #{tpu_custom_call.1} parent=23 // pred_check
          %p186 = pneg %p35
        $region26: #{tpu_custom_call.1} parent=23 // pred_check_branch
          %188 = sbr.rel (%p186) target = $region28
        $region27: #{tpu_custom_call.1} parent=23 // pred_region
          %s189 = smul.u32 2, %s15
          %p190 = scmp.lt.s32.totalorder %s189, 3
          %s191 = scalar_select %p190, %s189, 3
          %s192 = smul.addr %s191, 2
          %s193 = smul.addr %s192, 8
          %s194 = scalar_lea.vmem %s0, %s193
          %s195 = smul.u32 2, %s15
        $region28: #{tpu_custom_call.1} parent=23 // pred_fallthru
          _
        // Predicated region
        $region29: #{tpu_custom_call.1} parent=23 // pred_check
          %p196 = pneg %p61
        $region30: #{tpu_custom_call.1} parent=23 // pred_check_branch
          %198 = sbr.rel (%p196) target = $region32
        $region31: #{tpu_custom_call.1} parent=23 // pred_region
          %s199 = smul.u32 2, %s15
          %p200 = scmp.lt.s32.totalorder %s199, 3
          %s201 = scalar_select %p200, %s199, 3
          %s202 = smul.addr %s201, 2
          %s203 = smul.addr %s202, 8
          %s204 = scalar_lea.vmem %s1, %s203
          %s205 = smul.u32 2, %s15
        $region32: #{tpu_custom_call.1} parent=23 // pred_fallthru
          _
      $region24: #{tpu_custom_call.1} parent=5 // pred_fallthru
        _
      %p206 = scmp.le.s32.totalorder 1, %s15
      %p207 = scmp.lt.s32.totalorder %s15, 3
      %p208 = pnand %p206, %p207
      %p209 = pneg %p208
      // Predicated region
      $region33: #{tpu_custom_call.1} parent=5 // pred_check
        _
      $region34: #{tpu_custom_call.1} parent=5 // pred_check_branch
        %211 = sbr.rel (%p208) target = $region36
      $region35: #{tpu_custom_call.1} parent=5 // pred_region
        %s212 = ssub.s32 %s15, 1
        %s213 = smul.u32 2, %s20
        %p214 = scmp.lt.s32.totalorder %s213, 3
        %s215 = scalar_select %p214, %s213, 3
        %s216 = smul.addr %s215, 2
        %s217 = smul.addr %s216, 8
        %s218 = scalar_lea.vmem %s0, %s217
        %p219 = pneg %p41
        %p220 = pneg %p38
        %s221 = smul.u32 2, %s20
        %p222 = scmp.lt.s32.totalorder %s221, 3
        %s223 = scalar_select %p222, %s221, 3
        %s224 = smul.addr %s223, 2
        %s225 = smul.addr %s224, 8
        %s226 = scalar_lea.vmem %s1, %s225
        %p227 = pneg %p67
        %p228 = pneg %p64
        %p229 = pneg %p88
        %p230 = pneg %p85
        %p231 = pneg %p109
        %p232 = pneg %p106
        %p233 = pneg %p135
        %p234 = pneg %p132
        %s235 = sand.u32 %s122, 1
        %s236 = scalar_lea.sflag [#allocation3], %s235
        %s237 = sand.u32 %s122, 1
        %s238 = smul.addr %s237, 2
        %s239 = scalar_lea.vmem [#allocation2], %s238
        %p240 = pneg %p161
        %p241 = pneg %p158
        %s242 = smul.u32 2, %s20
        %p243 = scmp.lt.s32.totalorder %s242, 3
        %s244 = scalar_select %p243, %s242, 3
        %s245 = smul.addr %s244, 2
        %s246 = smul.addr %s245, 8
        %s247 = scalar_lea.vmem %s5, %s246
        %s248 = smul.u32 2, %s20
        %p249 = scmp.lt.s32.totalorder %s248, 3
        %s250 = scalar_select %p249, %s248, 3
        %s251 = smul.addr %s250, 2
        %s252 = smul.addr %s251, 8
        %s253 = scalar_lea.vmem %s0, %s252
        %s254 = smul.u32 2, %s20
        %s255 = smul.u32 2, %s20
        %p256 = scmp.lt.s32.totalorder %s255, 3
        %s257 = scalar_select %p256, %s255, 3
        %s258 = smul.addr %s257, 2
        %s259 = smul.addr %s258, 8
        %s260 = scalar_lea.vmem %s1, %s259
        %s261 = smul.u32 2, %s20
        %s262 = smul.u32 2, %s20
        %s263 = smul.u32 2, %s20
        %p264 = scmp.lt.s32.totalorder %s263, 3
        %s265 = scalar_select %p264, %s263, 3
        %s266 = smul.addr %s265, 2
        %s267 = smul.addr %s266, 8
        %s268 = scalar_lea.vmem %s5, %s267
        %s269 = smul.u32 2, %s20
        %v270 = vld [vmem:[%s253] sm:$0xff]
        %v271 = vld [vmem:[%s253 + $0x8] sm:$0xff]
        %v272 = vld [vmem:[%s253 + $0x10] sm:$0xff]
        %v273 = vld [vmem:[%s253 + $0x18] sm:$0xff]
        %v274 = vld [vmem:[%s2] sm:$0xff]
        %v275 = vld [vmem:[%s2 + $0x8] sm:$0xff]
        %v276 = vld [vmem:[%s2 + $0x10] sm:$0xff]
        %v277 = vld [vmem:[%s2 + $0x18] sm:$0xff]
        %v278 = vld [vmem:[%s2 + $0x20] sm:$0xff]
        %v279 = vld [vmem:[%s2 + $0x28] sm:$0xff]
        %v280 = vld [vmem:[%s2 + $0x30] sm:$0xff]
        %v281 = vld [vmem:[%s2 + $0x38] sm:$0xff]
        %v282 = vld [vmem:[%s2 + $0x40] sm:$0xff]
        %v283 = vld [vmem:[%s2 + $0x48] sm:$0xff]
        %v284 = vld [vmem:[%s2 + $0x50] sm:$0xff]
        %v285 = vld [vmem:[%s2 + $0x58] sm:$0xff]
        %v286 = vld [vmem:[%s2 + $0x60] sm:$0xff]
        %v287 = vld [vmem:[%s2 + $0x68] sm:$0xff]
        %v288 = vld [vmem:[%s2 + $0x70] sm:$0xff]
        %v289 = vld [vmem:[%s2 + $0x78] sm:$0xff]
        %v290 = vand.u32 %v289, 4294901760
        %291 = vmatpush.msra.mxu0 %v290
        %v292 = vand.u32 %v288, 4294901760
        %293 = vmatpush.msra.mxu0 %v292
        %v294 = vand.u32 %v287, 4294901760
        %295 = vmatpush.msra.mxu0 %v294
        %v296 = vand.u32 %v286, 4294901760
        %297 = vmatpush.msra.mxu0 %v296
        %v298 = vand.u32 %v285, 4294901760
        %299 = vmatpush.msra.mxu0 %v298
        %v300 = vand.u32 %v284, 4294901760
        %301 = vmatpush.msra.mxu0 %v300
        %v302 = vand.u32 %v283, 4294901760
        %303 = vmatpush.msra.mxu0 %v302
        %v304 = vand.u32 %v282, 4294901760
        %305 = vmatpush.msra.mxu0 %v304
        %v306 = vand.u32 %v281, 4294901760
        %307 = vmatpush.msra.mxu0 %v306
        %v308 = vand.u32 %v280, 4294901760
        %309 = vmatpush.msra.mxu0 %v308
        %v310 = vand.u32 %v279, 4294901760
        %311 = vmatpush.msra.mxu0 %v310
        %v312 = vand.u32 %v278, 4294901760
        %313 = vmatpush.msra.mxu0 %v312
        %v314 = vand.u32 %v277, 4294901760
        %315 = vmatpush.msra.mxu0 %v314
        %v316 = vand.u32 %v276, 4294901760
        %317 = vmatpush.msra.mxu0 %v316
        %v318 = vand.u32 %v275, 4294901760
        %319 = vmatpush.msra.mxu0 %v318
        %v320 = vand.u32 %v274, 4294901760
        %321 = vmatpush.msra.mxu0 %v320
        %v322 = vand.u32 %v270, 4294901760
        %v323 = vsub.f32 %v270, %v322
        %v324 = vand.u32 %v323, 4294901760
        %v325 = vsub.f32 %v323, %v324
        %v326 = vand.u32 %v325, 4294901760
        %327 = vmatmul.f32.gmra.mxu0 %v326
        %v328 = vpop.f32.mrf.mxu0
        %v329 = vadd.f32 0.0, %v328
        %v330 = vand.u32 %v271, 4294901760
        %v331 = vsub.f32 %v271, %v330
        %v332 = vand.u32 %v331, 4294901760
        %v333 = vsub.f32 %v331, %v332
        %v334 = vand.u32 %v333, 4294901760
        %335 = vmatmul.f32.gmra.mxu0 %v334
        %v336 = vpop.f32.mrf.mxu0
        %v337 = vadd.f32 0.0, %v336
        %v338 = vand.u32 %v272, 4294901760
        %v339 = vsub.f32 %v272, %v338
        %v340 = vand.u32 %v339, 4294901760
        %v341 = vsub.f32 %v339, %v340
        %v342 = vand.u32 %v341, 4294901760
        %343 = vmatmul.f32.gmra.mxu0 %v342
        %v344 = vpop.f32.mrf.mxu0
        %v345 = vadd.f32 0.0, %v344
        %v346 = vand.u32 %v273, 4294901760
        %v347 = vsub.f32 %v273, %v346
        %v348 = vand.u32 %v347, 4294901760
        %v349 = vsub.f32 %v347, %v348
        %v350 = vand.u32 %v349, 4294901760
        %351 = vmatmul.f32.gmra.mxu0 %v350
        %v352 = vpop.f32.mrf.mxu0
        %v353 = vadd.f32 0.0, %v352
        %354 = vdwg.mxu0
        %v355 = vand.u32 %v289, 4294901760
        %v356 = vsub.f32 %v289, %v355
        %v357 = vand.u32 %v356, 4294901760
        %v358 = vsub.f32 %v356, %v357
        %v359 = vand.u32 %v358, 4294901760
        %360 = vmatpush.msra.mxu0 %v359
        %v361 = vand.u32 %v288, 4294901760
        %v362 = vsub.f32 %v288, %v361
        %v363 = vand.u32 %v362, 4294901760
        %v364 = vsub.f32 %v362, %v363
        %v365 = vand.u32 %v364, 4294901760
        %366 = vmatpush.msra.mxu0 %v365
        %v367 = vand.u32 %v287, 4294901760
        %v368 = vsub.f32 %v287, %v367
        %v369 = vand.u32 %v368, 4294901760
        %v370 = vsub.f32 %v368, %v369
        %v371 = vand.u32 %v370, 4294901760
        %372 = vmatpush.msra.mxu0 %v371
        %v373 = vand.u32 %v286, 4294901760
        %v374 = vsub.f32 %v286, %v373
        %v375 = vand.u32 %v374, 4294901760
        %v376 = vsub.f32 %v374, %v375
        %v377 = vand.u32 %v376, 4294901760
        %378 = vmatpush.msra.mxu0 %v377
        %v379 = vand.u32 %v285, 4294901760
        %v380 = vsub.f32 %v285, %v379
        %v381 = vand.u32 %v380, 4294901760
        %v382 = vsub.f32 %v380, %v381
        %v383 = vand.u32 %v382, 4294901760
        %384 = vmatpush.msra.mxu0 %v383
        %v385 = vand.u32 %v284, 4294901760
        %v386 = vsub.f32 %v284, %v385
        %v387 = vand.u32 %v386, 4294901760
        %v388 = vsub.f32 %v386, %v387
        %v389 = vand.u32 %v388, 4294901760
        %390 = vmatpush.msra.mxu0 %v389
        %v391 = vand.u32 %v283, 4294901760
        %v392 = vsub.f32 %v283, %v391
        %v393 = vand.u32 %v392, 4294901760
        %v394 = vsub.f32 %v392, %v393
        %v395 = vand.u32 %v394, 4294901760
        %396 = vmatpush.msra.mxu0 %v395
        %v397 = vand.u32 %v282, 4294901760
        %v398 = vsub.f32 %v282, %v397
        %v399 = vand.u32 %v398, 4294901760
        %v400 = vsub.f32 %v398, %v399
        %v401 = vand.u32 %v400, 4294901760
        %402 = vmatpush.msra.mxu0 %v401
        %v403 = vand.u32 %v281, 4294901760
        %v404 = vsub.f32 %v281, %v403
        %v405 = vand.u32 %v404, 4294901760
        %v406 = vsub.f32 %v404, %v405
        %v407 = vand.u32 %v406, 4294901760
        %408 = vmatpush.msra.mxu0 %v407
        %v409 = vand.u32 %v280, 4294901760
        %v410 = vsub.f32 %v280, %v409
        %v411 = vand.u32 %v410, 4294901760
        %v412 = vsub.f32 %v410, %v411
        %v413 = vand.u32 %v412, 4294901760
        %414 = vmatpush.msra.mxu0 %v413
        %v415 = vand.u32 %v279, 4294901760
        %v416 = vsub.f32 %v279, %v415
        %v417 = vand.u32 %v416, 4294901760
        %v418 = vsub.f32 %v416, %v417
        %v419 = vand.u32 %v418, 4294901760
        %420 = vmatpush.msra.mxu0 %v419
        %v421 = vand.u32 %v278, 4294901760
        %v422 = vsub.f32 %v278, %v421
        %v423 = vand.u32 %v422, 4294901760
        %v424 = vsub.f32 %v422, %v423
        %v425 = vand.u32 %v424, 4294901760
        %426 = vmatpush.msra.mxu0 %v425
        %v427 = vand.u32 %v277, 4294901760
        %v428 = vsub.f32 %v277, %v427
        %v429 = vand.u32 %v428, 4294901760
        %v430 = vsub.f32 %v428, %v429
        %v431 = vand.u32 %v430, 4294901760
        %432 = vmatpush.msra.mxu0 %v431
        %v433 = vand.u32 %v276, 4294901760
        %v434 = vsub.f32 %v276, %v433
        %v435 = vand.u32 %v434, 4294901760
        %v436 = vsub.f32 %v434, %v435
        %v437 = vand.u32 %v436, 4294901760
        %438 = vmatpush.msra.mxu0 %v437
        %v439 = vand.u32 %v275, 4294901760
        %v440 = vsub.f32 %v275, %v439
        %v441 = vand.u32 %v440, 4294901760
        %v442 = vsub.f32 %v440, %v441
        %v443 = vand.u32 %v442, 4294901760
        %444 = vmatpush.msra.mxu0 %v443
        %v445 = vand.u32 %v274, 4294901760
        %v446 = vsub.f32 %v274, %v445
        %v447 = vand.u32 %v446, 4294901760
        %v448 = vsub.f32 %v446, %v447
        %v449 = vand.u32 %v448, 4294901760
        %450 = vmatpush.msra.mxu0 %v449
        %v451 = vand.u32 %v270, 4294901760
        %452 = vmatmul.f32.gmra.mxu0 %v451
        %v453 = vpop.f32.mrf.mxu0
        %v454 = vadd.f32 %v329, %v453
        %v455 = vand.u32 %v271, 4294901760
        %456 = vmatmul.f32.gmra.mxu0 %v455
        %v457 = vpop.f32.mrf.mxu0
        %v458 = vadd.f32 %v337, %v457
        %v459 = vand.u32 %v272, 4294901760
        %460 = vmatmul.f32.gmra.mxu0 %v459
        %v461 = vpop.f32.mrf.mxu0
        %v462 = vadd.f32 %v345, %v461
        %v463 = vand.u32 %v273, 4294901760
        %464 = vmatmul.f32.gmra.mxu0 %v463
        %v465 = vpop.f32.mrf.mxu0
        %v466 = vadd.f32 %v353, %v465
        %467 = vdwg.mxu0
        %v468 = vand.u32 %v289, 4294901760
        %v469 = vsub.f32 %v289, %v468
        %470 = vmatpush.msra.mxu0 %v469
        %v471 = vand.u32 %v288, 4294901760
        %v472 = vsub.f32 %v288, %v471
        %473 = vmatpush.msra.mxu0 %v472
        %v474 = vand.u32 %v287, 4294901760
        %v475 = vsub.f32 %v287, %v474
        %476 = vmatpush.msra.mxu0 %v475
        %v477 = vand.u32 %v286, 4294901760
        %v478 = vsub.f32 %v286, %v477
        %479 = vmatpush.msra.mxu0 %v478
        %v480 = vand.u32 %v285, 4294901760
        %v481 = vsub.f32 %v285, %v480
        %482 = vmatpush.msra.mxu0 %v481
        %v483 = vand.u32 %v284, 4294901760
        %v484 = vsub.f32 %v284, %v483
        %485 = vmatpush.msra.mxu0 %v484
        %v486 = vand.u32 %v283, 4294901760
        %v487 = vsub.f32 %v283, %v486
        %488 = vmatpush.msra.mxu0 %v487
        %v489 = vand.u32 %v282, 4294901760
        %v490 = vsub.f32 %v282, %v489
        %491 = vmatpush.msra.mxu0 %v490
        %v492 = vand.u32 %v281, 4294901760
        %v493 = vsub.f32 %v281, %v492
        %494 = vmatpush.msra.mxu0 %v493
        %v495 = vand.u32 %v280, 4294901760
        %v496 = vsub.f32 %v280, %v495
        %497 = vmatpush.msra.mxu0 %v496
        %v498 = vand.u32 %v279, 4294901760
        %v499 = vsub.f32 %v279, %v498
        %500 = vmatpush.msra.mxu0 %v499
        %v501 = vand.u32 %v278, 4294901760
        %v502 = vsub.f32 %v278, %v501
        %503 = vmatpush.msra.mxu0 %v502
        %v504 = vand.u32 %v277, 4294901760
        %v505 = vsub.f32 %v277, %v504
        %506 = vmatpush.msra.mxu0 %v505
        %v507 = vand.u32 %v276, 4294901760
        %v508 = vsub.f32 %v276, %v507
        %509 = vmatpush.msra.mxu0 %v508
        %v510 = vand.u32 %v275, 4294901760
        %v511 = vsub.f32 %v275, %v510
        %512 = vmatpush.msra.mxu0 %v511
        %v513 = vand.u32 %v274, 4294901760
        %v514 = vsub.f32 %v274, %v513
        %515 = vmatpush.msra.mxu0 %v514
        %v516 = vand.u32 %v270, 4294901760
        %v517 = vsub.f32 %v270, %v516
        %518 = vmatmul.f32.gmra.mxu0 %v517
        %v519 = vpop.f32.mrf.mxu0
        %v520 = vadd.f32 %v454, %v519
        %v521 = vand.u32 %v271, 4294901760
        %v522 = vsub.f32 %v271, %v521
        %523 = vmatmul.f32.gmra.mxu0 %v522
        %v524 = vpop.f32.mrf.mxu0
        %v525 = vadd.f32 %v458, %v524
        %v526 = vand.u32 %v272, 4294901760
        %v527 = vsub.f32 %v272, %v526
        %528 = vmatmul.f32.gmra.mxu0 %v527
        %v529 = vpop.f32.mrf.mxu0
        %v530 = vadd.f32 %v462, %v529
        %v531 = vand.u32 %v273, 4294901760
        %v532 = vsub.f32 %v273, %v531
        %533 = vmatmul.f32.gmra.mxu0 %v532
        %v534 = vpop.f32.mrf.mxu0
        %v535 = vadd.f32 %v466, %v534
        %536 = vdwg.mxu0
        %v537 = vand.u32 %v289, 4294901760
        %538 = vmatpush.msra.mxu0 %v537
        %v539 = vand.u32 %v288, 4294901760
        %540 = vmatpush.msra.mxu0 %v539
        %v541 = vand.u32 %v287, 4294901760
        %542 = vmatpush.msra.mxu0 %v541
        %v543 = vand.u32 %v286, 4294901760
        %544 = vmatpush.msra.mxu0 %v543
        %v545 = vand.u32 %v285, 4294901760
        %546 = vmatpush.msra.mxu0 %v545
        %v547 = vand.u32 %v284, 4294901760
        %548 = vmatpush.msra.mxu0 %v547
        %v549 = vand.u32 %v283, 4294901760
        %550 = vmatpush.msra.mxu0 %v549
        %v551 = vand.u32 %v282, 4294901760
        %552 = vmatpush.msra.mxu0 %v551
        %v553 = vand.u32 %v281, 4294901760
        %554 = vmatpush.msra.mxu0 %v553
        %v555 = vand.u32 %v280, 4294901760
        %556 = vmatpush.msra.mxu0 %v555
        %v557 = vand.u32 %v279, 4294901760
        %558 = vmatpush.msra.mxu0 %v557
        %v559 = vand.u32 %v278, 4294901760
        %560 = vmatpush.msra.mxu0 %v559
        %v561 = vand.u32 %v277, 4294901760
        %562 = vmatpush.msra.mxu0 %v561
        %v563 = vand.u32 %v276, 4294901760
        %564 = vmatpush.msra.mxu0 %v563
        %v565 = vand.u32 %v275, 4294901760
        %566 = vmatpush.msra.mxu0 %v565
        %v567 = vand.u32 %v274, 4294901760
        %568 = vmatpush.msra.mxu0 %v567
        %v569 = vand.u32 %v270, 4294901760
        %v570 = vsub.f32 %v270, %v569
        %v571 = vand.u32 %v570, 4294901760
        %572 = vmatmul.f32.gmra.mxu0 %v571
        %v573 = vpop.f32.mrf.mxu0
        %v574 = vadd.f32 %v520, %v573
        %v575 = vand.u32 %v271, 4294901760
        %v576 = vsub.f32 %v271, %v575
        %v577 = vand.u32 %v576, 4294901760
        %578 = vmatmul.f32.gmra.mxu0 %v577
        %v579 = vpop.f32.mrf.mxu0
        %v580 = vadd.f32 %v525, %v579
        %v581 = vand.u32 %v272, 4294901760
        %v582 = vsub.f32 %v272, %v581
        %v583 = vand.u32 %v582, 4294901760
        %584 = vmatmul.f32.gmra.mxu0 %v583
        %v585 = vpop.f32.mrf.mxu0
        %v586 = vadd.f32 %v530, %v585
        %v587 = vand.u32 %v273, 4294901760
        %v588 = vsub.f32 %v273, %v587
        %v589 = vand.u32 %v588, 4294901760
        %590 = vmatmul.f32.gmra.mxu0 %v589
        %v591 = vpop.f32.mrf.mxu0
        %v592 = vadd.f32 %v535, %v591
        %593 = vdwg.mxu0
        %v594 = vand.u32 %v289, 4294901760
        %v595 = vsub.f32 %v289, %v594
        %v596 = vand.u32 %v595, 4294901760
        %597 = vmatpush.msra.mxu0 %v596
        %v598 = vand.u32 %v288, 4294901760
        %v599 = vsub.f32 %v288, %v598
        %v600 = vand.u32 %v599, 4294901760
        %601 = vmatpush.msra.mxu0 %v600
        %v602 = vand.u32 %v287, 4294901760
        %v603 = vsub.f32 %v287, %v602
        %v604 = vand.u32 %v603, 4294901760
        %605 = vmatpush.msra.mxu0 %v604
        %v606 = vand.u32 %v286, 4294901760
        %v607 = vsub.f32 %v286, %v606
        %v608 = vand.u32 %v607, 4294901760
        %609 = vmatpush.msra.mxu0 %v608
        %v610 = vand.u32 %v285, 4294901760
        %v611 = vsub.f32 %v285, %v610
        %v612 = vand.u32 %v611, 4294901760
        %613 = vmatpush.msra.mxu0 %v612
        %v614 = vand.u32 %v284, 4294901760
        %v615 = vsub.f32 %v284, %v614
        %v616 = vand.u32 %v615, 4294901760
        %617 = vmatpush.msra.mxu0 %v616
        %v618 = vand.u32 %v283, 4294901760
        %v619 = vsub.f32 %v283, %v618
        %v620 = vand.u32 %v619, 4294901760
        %621 = vmatpush.msra.mxu0 %v620
        %v622 = vand.u32 %v282, 4294901760
        %v623 = vsub.f32 %v282, %v622
        %v624 = vand.u32 %v623, 4294901760
        %625 = vmatpush.msra.mxu0 %v624
        %v626 = vand.u32 %v281, 4294901760
        %v627 = vsub.f32 %v281, %v626
        %v628 = vand.u32 %v627, 4294901760
        %629 = vmatpush.msra.mxu0 %v628
        %v630 = vand.u32 %v280, 4294901760
        %v631 = vsub.f32 %v280, %v630
        %v632 = vand.u32 %v631, 4294901760
        %633 = vmatpush.msra.mxu0 %v632
        %v634 = vand.u32 %v279, 4294901760
        %v635 = vsub.f32 %v279, %v634
        %v636 = vand.u32 %v635, 4294901760
        %637 = vmatpush.msra.mxu0 %v636
        %v638 = vand.u32 %v278, 4294901760
        %v639 = vsub.f32 %v278, %v638
        %v640 = vand.u32 %v639, 4294901760
        %641 = vmatpush.msra.mxu0 %v640
        %v642 = vand.u32 %v277, 4294901760
        %v643 = vsub.f32 %v277, %v642
        %v644 = vand.u32 %v643, 4294901760
        %645 = vmatpush.msra.mxu0 %v644
        %v646 = vand.u32 %v276, 4294901760
        %v647 = vsub.f32 %v276, %v646
        %v648 = vand.u32 %v647, 4294901760
        %649 = vmatpush.msra.mxu0 %v648
        %v650 = vand.u32 %v275, 4294901760
        %v651 = vsub.f32 %v275, %v650
        %v652 = vand.u32 %v651, 4294901760
        %653 = vmatpush.msra.mxu0 %v652
        %v654 = vand.u32 %v274, 4294901760
        %v655 = vsub.f32 %v274, %v654
        %v656 = vand.u32 %v655, 4294901760
        %657 = vmatpush.msra.mxu0 %v656
        %v658 = vand.u32 %v270, 4294901760
        %659 = vmatmul.f32.gmra.mxu0 %v658
        %v660 = vpop.f32.mrf.mxu0
        %v661 = vadd.f32 %v574, %v660
        %v662 = vand.u32 %v271, 4294901760
        %663 = vmatmul.f32.gmra.mxu0 %v662
        %v664 = vpop.f32.mrf.mxu0
        %v665 = vadd.f32 %v580, %v664
        %v666 = vand.u32 %v272, 4294901760
        %667 = vmatmul.f32.gmra.mxu0 %v666
        %v668 = vpop.f32.mrf.mxu0
        %v669 = vadd.f32 %v586, %v668
        %v670 = vand.u32 %v273, 4294901760
        %671 = vmatmul.f32.gmra.mxu0 %v670
        %v672 = vpop.f32.mrf.mxu0
        %v673 = vadd.f32 %v592, %v672
        %674 = vdwg.mxu0
        %v675 = vand.u32 %v289, 4294901760
        %676 = vmatpush.msra.mxu0 %v675
        %v677 = vand.u32 %v288, 4294901760
        %678 = vmatpush.msra.mxu0 %v677
        %v679 = vand.u32 %v287, 4294901760
        %680 = vmatpush.msra.mxu0 %v679
        %v681 = vand.u32 %v286, 4294901760
        %682 = vmatpush.msra.mxu0 %v681
        %v683 = vand.u32 %v285, 4294901760
        %684 = vmatpush.msra.mxu0 %v683
        %v685 = vand.u32 %v284, 4294901760
        %686 = vmatpush.msra.mxu0 %v685
        %v687 = vand.u32 %v283, 4294901760
        %688 = vmatpush.msra.mxu0 %v687
        %v689 = vand.u32 %v282, 4294901760
        %690 = vmatpush.msra.mxu0 %v689
        %v691 = vand.u32 %v281, 4294901760
        %692 = vmatpush.msra.mxu0 %v691
        %v693 = vand.u32 %v280, 4294901760
        %694 = vmatpush.msra.mxu0 %v693
        %v695 = vand.u32 %v279, 4294901760
        %696 = vmatpush.msra.mxu0 %v695
        %v697 = vand.u32 %v278, 4294901760
        %698 = vmatpush.msra.mxu0 %v697
        %v699 = vand.u32 %v277, 4294901760
        %700 = vmatpush.msra.mxu0 %v699
        %v701 = vand.u32 %v276, 4294901760
        %702 = vmatpush.msra.mxu0 %v701
        %v703 = vand.u32 %v275, 4294901760
        %704 = vmatpush.msra.mxu0 %v703
        %v705 = vand.u32 %v274, 4294901760
        %706 = vmatpush.msra.mxu0 %v705
        %v707 = vand.u32 %v270, 4294901760
        %708 = vmatmul.f32.gmra.mxu0 %v707
        %v709 = vpop.f32.mrf.mxu0
        %v710 = vadd.f32 %v661, %v709
        %v711 = vand.u32 %v271, 4294901760
        %712 = vmatmul.f32.gmra.mxu0 %v711
        %v713 = vpop.f32.mrf.mxu0
        %v714 = vadd.f32 %v665, %v713
        %v715 = vand.u32 %v272, 4294901760
        %716 = vmatmul.f32.gmra.mxu0 %v715
        %v717 = vpop.f32.mrf.mxu0
        %v718 = vadd.f32 %v669, %v717
        %v719 = vand.u32 %v273, 4294901760
        %720 = vmatmul.f32.gmra.mxu0 %v719
        %v721 = vpop.f32.mrf.mxu0
        %v722 = vadd.f32 %v673, %v721
        %723 = vdwg.mxu0
        %v724 = vtanh.pop %v710
        %v725 = vtanh.pop %v714
        %v726 = vtanh.pop %v718
        %v727 = vtanh.pop %v722
        %v728 = vld [vmem:[%s3] sm:$0xff]
        %v729 = vld [vmem:[%s3 + $0x8] sm:$0xff]
        %v730 = vld [vmem:[%s3 + $0x10] sm:$0xff]
        %v731 = vld [vmem:[%s3 + $0x18] sm:$0xff]
        %v732 = vld [vmem:[%s3 + $0x20] sm:$0xff]
        %v733 = vld [vmem:[%s3 + $0x28] sm:$0xff]
        %v734 = vld [vmem:[%s3 + $0x30] sm:$0xff]
        %v735 = vld [vmem:[%s3 + $0x38] sm:$0xff]
        %v736 = vld [vmem:[%s3 + $0x40] sm:$0xff]
        %v737 = vld [vmem:[%s3 + $0x48] sm:$0xff]
        %v738 = vld [vmem:[%s3 + $0x50] sm:$0xff]
        %v739 = vld [vmem:[%s3 + $0x58] sm:$0xff]
        %v740 = vld [vmem:[%s3 + $0x60] sm:$0xff]
        %v741 = vld [vmem:[%s3 + $0x68] sm:$0xff]
        %v742 = vld [vmem:[%s3 + $0x70] sm:$0xff]
        %v743 = vld [vmem:[%s3 + $0x78] sm:$0xff]
        %v744 = vand.u32 %v743, 4294901760
        %745 = vmatpush.msra.mxu0 %v744
        %v746 = vand.u32 %v742, 4294901760
        %747 = vmatpush.msra.mxu0 %v746
        %v748 = vand.u32 %v741, 4294901760
        %749 = vmatpush.msra.mxu0 %v748
        %v750 = vand.u32 %v740, 4294901760
        %751 = vmatpush.msra.mxu0 %v750
        %v752 = vand.u32 %v739, 4294901760
        %753 = vmatpush.msra.mxu0 %v752
        %v754 = vand.u32 %v738, 4294901760
        %755 = vmatpush.msra.mxu0 %v754
        %v756 = vand.u32 %v737, 4294901760
        %757 = vmatpush.msra.mxu0 %v756
        %v758 = vand.u32 %v736, 4294901760
        %759 = vmatpush.msra.mxu0 %v758
        %v760 = vand.u32 %v735, 4294901760
        %761 = vmatpush.msra.mxu0 %v760
        %v762 = vand.u32 %v734, 4294901760
        %763 = vmatpush.msra.mxu0 %v762
        %v764 = vand.u32 %v733, 4294901760
        %765 = vmatpush.msra.mxu0 %v764
        %v766 = vand.u32 %v732, 4294901760
        %767 = vmatpush.msra.mxu0 %v766
        %v768 = vand.u32 %v731, 4294901760
        %769 = vmatpush.msra.mxu0 %v768
        %v770 = vand.u32 %v730, 4294901760
        %771 = vmatpush.msra.mxu0 %v770
        %v772 = vand.u32 %v729, 4294901760
        %773 = vmatpush.msra.mxu0 %v772
        %v774 = vand.u32 %v728, 4294901760
        %775 = vmatpush.msra.mxu0 %v774
        %v776 = vand.u32 %v724, 4294901760
        %v777 = vsub.f32 %v724, %v776
        %v778 = vand.u32 %v777, 4294901760
        %v779 = vsub.f32 %v777, %v778
        %v780 = vand.u32 %v779, 4294901760
        %781 = vmatmul.f32.gmra.mxu0 %v780
        %v782 = vpop.f32.mrf.mxu0
        %v783 = vadd.f32 0.0, %v782
        %v784 = vand.u32 %v725, 4294901760
        %v785 = vsub.f32 %v725, %v784
        %v786 = vand.u32 %v785, 4294901760
        %v787 = vsub.f32 %v785, %v786
        %v788 = vand.u32 %v787, 4294901760
        %789 = vmatmul.f32.gmra.mxu0 %v788
        %v790 = vpop.f32.mrf.mxu0
        %v791 = vadd.f32 0.0, %v790
        %v792 = vand.u32 %v726, 4294901760
        %v793 = vsub.f32 %v726, %v792
        %v794 = vand.u32 %v793, 4294901760
        %v795 = vsub.f32 %v793, %v794
        %v796 = vand.u32 %v795, 4294901760
        %797 = vmatmul.f32.gmra.mxu0 %v796
        %v798 = vpop.f32.mrf.mxu0
        %v799 = vadd.f32 0.0, %v798
        %v800 = vand.u32 %v727, 4294901760
        %v801 = vsub.f32 %v727, %v800
        %v802 = vand.u32 %v801, 4294901760
        %v803 = vsub.f32 %v801, %v802
        %v804 = vand.u32 %v803, 4294901760
        %805 = vmatmul.f32.gmra.mxu0 %v804
        %v806 = vpop.f32.mrf.mxu0
        %v807 = vadd.f32 0.0, %v806
        %808 = vdwg.mxu0
        %v809 = vand.u32 %v743, 4294901760
        %v810 = vsub.f32 %v743, %v809
        %v811 = vand.u32 %v810, 4294901760
        %v812 = vsub.f32 %v810, %v811
        %v813 = vand.u32 %v812, 4294901760
        %814 = vmatpush.msra.mxu0 %v813
        %v815 = vand.u32 %v742, 4294901760
        %v816 = vsub.f32 %v742, %v815
        %v817 = vand.u32 %v816, 4294901760
        %v818 = vsub.f32 %v816, %v817
        %v819 = vand.u32 %v818, 4294901760
        %820 = vmatpush.msra.mxu0 %v819
        %v821 = vand.u32 %v741, 4294901760
        %v822 = vsub.f32 %v741, %v821
        %v823 = vand.u32 %v822, 4294901760
        %v824 = vsub.f32 %v822, %v823
        %v825 = vand.u32 %v824, 4294901760
        %826 = vmatpush.msra.mxu0 %v825
        %v827 = vand.u32 %v740, 4294901760
        %v828 = vsub.f32 %v740, %v827
        %v829 = vand.u32 %v828, 4294901760
        %v830 = vsub.f32 %v828, %v829
        %v831 = vand.u32 %v830, 4294901760
        %832 = vmatpush.msra.mxu0 %v831
        %v833 = vand.u32 %v739, 4294901760
        %v834 = vsub.f32 %v739, %v833
        %v835 = vand.u32 %v834, 4294901760
        %v836 = vsub.f32 %v834, %v835
        %v837 = vand.u32 %v836, 4294901760
        %838 = vmatpush.msra.mxu0 %v837
        %v839 = vand.u32 %v738, 4294901760
        %v840 = vsub.f32 %v738, %v839
        %v841 = vand.u32 %v840, 4294901760
        %v842 = vsub.f32 %v840, %v841
        %v843 = vand.u32 %v842, 4294901760
        %844 = vmatpush.msra.mxu0 %v843
        %v845 = vand.u32 %v737, 4294901760
        %v846 = vsub.f32 %v737, %v845
        %v847 = vand.u32 %v846, 4294901760
        %v848 = vsub.f32 %v846, %v847
        %v849 = vand.u32 %v848, 4294901760
        %850 = vmatpush.msra.mxu0 %v849
        %v851 = vand.u32 %v736, 4294901760
        %v852 = vsub.f32 %v736, %v851
        %v853 = vand.u32 %v852, 4294901760
        %v854 = vsub.f32 %v852, %v853
        %v855 = vand.u32 %v854, 4294901760
        %856 = vmatpush.msra.mxu0 %v855
        %v857 = vand.u32 %v735, 4294901760
        %v858 = vsub.f32 %v735, %v857
        %v859 = vand.u32 %v858, 4294901760
        %v860 = vsub.f32 %v858, %v859
        %v861 = vand.u32 %v860, 4294901760
        %862 = vmatpush.msra.mxu0 %v861
        %v863 = vand.u32 %v734, 4294901760
        %v864 = vsub.f32 %v734, %v863
        %v865 = vand.u32 %v864, 4294901760
        %v866 = vsub.f32 %v864, %v865
        %v867 = vand.u32 %v866, 4294901760
        %868 = vmatpush.msra.mxu0 %v867
        %v869 = vand.u32 %v733, 4294901760
        %v870 = vsub.f32 %v733, %v869
        %v871 = vand.u32 %v870, 4294901760
        %v872 = vsub.f32 %v870, %v871
        %v873 = vand.u32 %v872, 4294901760
        %874 = vmatpush.msra.mxu0 %v873
        %v875 = vand.u32 %v732, 4294901760
        %v876 = vsub.f32 %v732, %v875
        %v877 = vand.u32 %v876, 4294901760
        %v878 = vsub.f32 %v876, %v877
        %v879 = vand.u32 %v878, 4294901760
        %880 = vmatpush.msra.mxu0 %v879
        %v881 = vand.u32 %v731, 4294901760
        %v882 = vsub.f32 %v731, %v881
        %v883 = vand.u32 %v882, 4294901760
        %v884 = vsub.f32 %v882, %v883
        %v885 = vand.u32 %v884, 4294901760
        %886 = vmatpush.msra.mxu0 %v885
        %v887 = vand.u32 %v730, 4294901760
        %v888 = vsub.f32 %v730, %v887
        %v889 = vand.u32 %v888, 4294901760
        %v890 = vsub.f32 %v888, %v889
        %v891 = vand.u32 %v890, 4294901760
        %892 = vmatpush.msra.mxu0 %v891
        %v893 = vand.u32 %v729, 4294901760
        %v894 = vsub.f32 %v729, %v893
        %v895 = vand.u32 %v894, 4294901760
        %v896 = vsub.f32 %v894, %v895
        %v897 = vand.u32 %v896, 4294901760
        %898 = vmatpush.msra.mxu0 %v897
        %v899 = vand.u32 %v728, 4294901760
        %v900 = vsub.f32 %v728, %v899
        %v901 = vand.u32 %v900, 4294901760
        %v902 = vsub.f32 %v900, %v901
        %v903 = vand.u32 %v902, 4294901760
        %904 = vmatpush.msra.mxu0 %v903
        %v905 = vand.u32 %v724, 4294901760
        %906 = vmatmul.f32.gmra.mxu0 %v905
        %v907 = vpop.f32.mrf.mxu0
        %v908 = vadd.f32 %v783, %v907
        %v909 = vand.u32 %v725, 4294901760
        %910 = vmatmul.f32.gmra.mxu0 %v909
        %v911 = vpop.f32.mrf.mxu0
        %v912 = vadd.f32 %v791, %v911
        %v913 = vand.u32 %v726, 4294901760
        %914 = vmatmul.f32.gmra.mxu0 %v913
        %v915 = vpop.f32.mrf.mxu0
        %v916 = vadd.f32 %v799, %v915
        %v917 = vand.u32 %v727, 4294901760
        %918 = vmatmul.f32.gmra.mxu0 %v917
        %v919 = vpop.f32.mrf.mxu0
        %v920 = vadd.f32 %v807, %v919
        %921 = vdwg.mxu0
        %v922 = vand.u32 %v743, 4294901760
        %v923 = vsub.f32 %v743, %v922
        %924 = vmatpush.msra.mxu0 %v923
        %v925 = vand.u32 %v742, 4294901760
        %v926 = vsub.f32 %v742, %v925
        %927 = vmatpush.msra.mxu0 %v926
        %v928 = vand.u32 %v741, 4294901760
        %v929 = vsub.f32 %v741, %v928
        %930 = vmatpush.msra.mxu0 %v929
        %v931 = vand.u32 %v740, 4294901760
        %v932 = vsub.f32 %v740, %v931
        %933 = vmatpush.msra.mxu0 %v932
        %v934 = vand.u32 %v739, 4294901760
        %v935 = vsub.f32 %v739, %v934
        %936 = vmatpush.msra.mxu0 %v935
        %v937 = vand.u32 %v738, 4294901760
        %v938 = vsub.f32 %v738, %v937
        %939 = vmatpush.msra.mxu0 %v938
        %v940 = vand.u32 %v737, 4294901760
        %v941 = vsub.f32 %v737, %v940
        %942 = vmatpush.msra.mxu0 %v941
        %v943 = vand.u32 %v736, 4294901760
        %v944 = vsub.f32 %v736, %v943
        %945 = vmatpush.msra.mxu0 %v944
        %v946 = vand.u32 %v735, 4294901760
        %v947 = vsub.f32 %v735, %v946
        %948 = vmatpush.msra.mxu0 %v947
        %v949 = vand.u32 %v734, 4294901760
        %v950 = vsub.f32 %v734, %v949
        %951 = vmatpush.msra.mxu0 %v950
        %v952 = vand.u32 %v733, 4294901760
        %v953 = vsub.f32 %v733, %v952
        %954 = vmatpush.msra.mxu0 %v953
        %v955 = vand.u32 %v732, 4294901760
        %v956 = vsub.f32 %v732, %v955
        %957 = vmatpush.msra.mxu0 %v956
        %v958 = vand.u32 %v731, 4294901760
        %v959 = vsub.f32 %v731, %v958
        %960 = vmatpush.msra.mxu0 %v959
        %v961 = vand.u32 %v730, 4294901760
        %v962 = vsub.f32 %v730, %v961
        %963 = vmatpush.msra.mxu0 %v962
        %v964 = vand.u32 %v729, 4294901760
        %v965 = vsub.f32 %v729, %v964
        %966 = vmatpush.msra.mxu0 %v965
        %v967 = vand.u32 %v728, 4294901760
        %v968 = vsub.f32 %v728, %v967
        %969 = vmatpush.msra.mxu0 %v968
        %v970 = vand.u32 %v724, 4294901760
        %v971 = vsub.f32 %v724, %v970
        %972 = vmatmul.f32.gmra.mxu0 %v971
        %v973 = vpop.f32.mrf.mxu0
        %v974 = vadd.f32 %v908, %v973
        %v975 = vand.u32 %v725, 4294901760
        %v976 = vsub.f32 %v725, %v975
        %977 = vmatmul.f32.gmra.mxu0 %v976
        %v978 = vpop.f32.mrf.mxu0
        %v979 = vadd.f32 %v912, %v978
        %v980 = vand.u32 %v726, 4294901760
        %v981 = vsub.f32 %v726, %v980
        %982 = vmatmul.f32.gmra.mxu0 %v981
        %v983 = vpop.f32.mrf.mxu0
        %v984 = vadd.f32 %v916, %v983
        %v985 = vand.u32 %v727, 4294901760
        %v986 = vsub.f32 %v727, %v985
        %987 = vmatmul.f32.gmra.mxu0 %v986
        %v988 = vpop.f32.mrf.mxu0
        %v989 = vadd.f32 %v920, %v988
        %990 = vdwg.mxu0
        %v991 = vand.u32 %v743, 4294901760
        %992 = vmatpush.msra.mxu0 %v991
        %v993 = vand.u32 %v742, 4294901760
        %994 = vmatpush.msra.mxu0 %v993
        %v995 = vand.u32 %v741, 4294901760
        %996 = vmatpush.msra.mxu0 %v995
        %v997 = vand.u32 %v740, 4294901760
        %998 = vmatpush.msra.mxu0 %v997
        %v999 = vand.u32 %v739, 4294901760
        %1000 = vmatpush.msra.mxu0 %v999
        %v1001 = vand.u32 %v738, 4294901760
        %1002 = vmatpush.msra.mxu0 %v1001
        %v1003 = vand.u32 %v737, 4294901760
        %1004 = vmatpush.msra.mxu0 %v1003
        %v1005 = vand.u32 %v736, 4294901760
        %1006 = vmatpush.msra.mxu0 %v1005
        %v1007 = vand.u32 %v735, 4294901760
        %1008 = vmatpush.msra.mxu0 %v1007
        %v1009 = vand.u32 %v734, 4294901760
        %1010 = vmatpush.msra.mxu0 %v1009
        %v1011 = vand.u32 %v733, 4294901760
        %1012 = vmatpush.msra.mxu0 %v1011
        %v1013 = vand.u32 %v732, 4294901760
        %1014 = vmatpush.msra.mxu0 %v1013
        %v1015 = vand.u32 %v731, 4294901760
        %1016 = vmatpush.msra.mxu0 %v1015
        %v1017 = vand.u32 %v730, 4294901760
        %1018 = vmatpush.msra.mxu0 %v1017
        %v1019 = vand.u32 %v729, 4294901760
        %1020 = vmatpush.msra.mxu0 %v1019
        %v1021 = vand.u32 %v728, 4294901760
        %1022 = vmatpush.msra.mxu0 %v1021
        %v1023 = vand.u32 %v724, 4294901760
        %v1024 = vsub.f32 %v724, %v1023
        %v1025 = vand.u32 %v1024, 4294901760
        %1026 = vmatmul.f32.gmra.mxu0 %v1025
        %v1027 = vpop.f32.mrf.mxu0
        %v1028 = vadd.f32 %v974, %v1027
        %v1029 = vand.u32 %v725, 4294901760
        %v1030 = vsub.f32 %v725, %v1029
        %v1031 = vand.u32 %v1030, 4294901760
        %1032 = vmatmul.f32.gmra.mxu0 %v1031
        %v1033 = vpop.f32.mrf.mxu0
        %v1034 = vadd.f32 %v979, %v1033
        %v1035 = vand.u32 %v726, 4294901760
        %v1036 = vsub.f32 %v726, %v1035
        %v1037 = vand.u32 %v1036, 4294901760
        %1038 = vmatmul.f32.gmra.mxu0 %v1037
        %v1039 = vpop.f32.mrf.mxu0
        %v1040 = vadd.f32 %v984, %v1039
        %v1041 = vand.u32 %v727, 4294901760
        %v1042 = vsub.f32 %v727, %v1041
        %v1043 = vand.u32 %v1042, 4294901760
        %1044 = vmatmul.f32.gmra.mxu0 %v1043
        %v1045 = vpop.f32.mrf.mxu0
        %v1046 = vadd.f32 %v989, %v1045
        %1047 = vdwg.mxu0
        %v1048 = vand.u32 %v743, 4294901760
        %v1049 = vsub.f32 %v743, %v1048
        %v1050 = vand.u32 %v1049, 4294901760
        %1051 = vmatpush.msra.mxu0 %v1050
        %v1052 = vand.u32 %v742, 4294901760
        %v1053 = vsub.f32 %v742, %v1052
        %v1054 = vand.u32 %v1053, 4294901760
        %1055 = vmatpush.msra.mxu0 %v1054
        %v1056 = vand.u32 %v741, 4294901760
        %v1057 = vsub.f32 %v741, %v1056
        %v1058 = vand.u32 %v1057, 4294901760
        %1059 = vmatpush.msra.mxu0 %v1058
        %v1060 = vand.u32 %v740, 4294901760
        %v1061 = vsub.f32 %v740, %v1060
        %v1062 = vand.u32 %v1061, 4294901760
        %1063 = vmatpush.msra.mxu0 %v1062
        %v1064 = vand.u32 %v739, 4294901760
        %v1065 = vsub.f32 %v739, %v1064
        %v1066 = vand.u32 %v1065, 4294901760
        %1067 = vmatpush.msra.mxu0 %v1066
        %v1068 = vand.u32 %v738, 4294901760
        %v1069 = vsub.f32 %v738, %v1068
        %v1070 = vand.u32 %v1069, 4294901760
        %1071 = vmatpush.msra.mxu0 %v1070
        %v1072 = vand.u32 %v737, 4294901760
        %v1073 = vsub.f32 %v737, %v1072
        %v1074 = vand.u32 %v1073, 4294901760
        %1075 = vmatpush.msra.mxu0 %v1074
        %v1076 = vand.u32 %v736, 4294901760
        %v1077 = vsub.f32 %v736, %v1076
        %v1078 = vand.u32 %v1077, 4294901760
        %1079 = vmatpush.msra.mxu0 %v1078
        %v1080 = vand.u32 %v735, 4294901760
        %v1081 = vsub.f32 %v735, %v1080
        %v1082 = vand.u32 %v1081, 4294901760
        %1083 = vmatpush.msra.mxu0 %v1082
        %v1084 = vand.u32 %v734, 4294901760
        %v1085 = vsub.f32 %v734, %v1084
        %v1086 = vand.u32 %v1085, 4294901760
        %1087 = vmatpush.msra.mxu0 %v1086
        %v1088 = vand.u32 %v733, 4294901760
        %v1089 = vsub.f32 %v733, %v1088
        %v1090 = vand.u32 %v1089, 4294901760
        %1091 = vmatpush.msra.mxu0 %v1090
        %v1092 = vand.u32 %v732, 4294901760
        %v1093 = vsub.f32 %v732, %v1092
        %v1094 = vand.u32 %v1093, 4294901760
        %1095 = vmatpush.msra.mxu0 %v1094
        %v1096 = vand.u32 %v731, 4294901760
        %v1097 = vsub.f32 %v731, %v1096
        %v1098 = vand.u32 %v1097, 4294901760
        %1099 = vmatpush.msra.mxu0 %v1098
        %v1100 = vand.u32 %v730, 4294901760
        %v1101 = vsub.f32 %v730, %v1100
        %v1102 = vand.u32 %v1101, 4294901760
        %1103 = vmatpush.msra.mxu0 %v1102
        %v1104 = vand.u32 %v729, 4294901760
        %v1105 = vsub.f32 %v729, %v1104
        %v1106 = vand.u32 %v1105, 4294901760
        %1107 = vmatpush.msra.mxu0 %v1106
        %v1108 = vand.u32 %v728, 4294901760
        %v1109 = vsub.f32 %v728, %v1108
        %v1110 = vand.u32 %v1109, 4294901760
        %1111 = vmatpush.msra.mxu0 %v1110
        %v1112 = vand.u32 %v724, 4294901760
        %1113 = vmatmul.f32.gmra.mxu0 %v1112
        %v1114 = vpop.f32.mrf.mxu0
        %v1115 = vadd.f32 %v1028, %v1114
        %v1116 = vand.u32 %v725, 4294901760
        %1117 = vmatmul.f32.gmra.mxu0 %v1116
        %v1118 = vpop.f32.mrf.mxu0
        %v1119 = vadd.f32 %v1034, %v1118
        %v1120 = vand.u32 %v726, 4294901760
        %1121 = vmatmul.f32.gmra.mxu0 %v1120
        %v1122 = vpop.f32.mrf.mxu0
        %v1123 = vadd.f32 %v1040, %v1122
        %v1124 = vand.u32 %v727, 4294901760
        %1125 = vmatmul.f32.gmra.mxu0 %v1124
        %v1126 = vpop.f32.mrf.mxu0
        %v1127 = vadd.f32 %v1046, %v1126
        %1128 = vdwg.mxu0
        %v1129 = vand.u32 %v743, 4294901760
        %1130 = vmatpush.msra.mxu0 %v1129
        %v1131 = vand.u32 %v742, 4294901760
        %1132 = vmatpush.msra.mxu0 %v1131
        %v1133 = vand.u32 %v741, 4294901760
        %1134 = vmatpush.msra.mxu0 %v1133
        %v1135 = vand.u32 %v740, 4294901760
        %1136 = vmatpush.msra.mxu0 %v1135
        %v1137 = vand.u32 %v739, 4294901760
        %1138 = vmatpush.msra.mxu0 %v1137
        %v1139 = vand.u32 %v738, 4294901760
        %1140 = vmatpush.msra.mxu0 %v1139
        %v1141 = vand.u32 %v737, 4294901760
        %1142 = vmatpush.msra.mxu0 %v1141
        %v1143 = vand.u32 %v736, 4294901760
        %1144 = vmatpush.msra.mxu0 %v1143
        %v1145 = vand.u32 %v735, 4294901760
        %1146 = vmatpush.msra.mxu0 %v1145
        %v1147 = vand.u32 %v734, 4294901760
        %1148 = vmatpush.msra.mxu0 %v1147
        %v1149 = vand.u32 %v733, 4294901760
        %1150 = vmatpush.msra.mxu0 %v1149
        %v1151 = vand.u32 %v732, 4294901760
        %1152 = vmatpush.msra.mxu0 %v1151
        %v1153 = vand.u32 %v731, 4294901760
        %1154 = vmatpush.msra.mxu0 %v1153
        %v1155 = vand.u32 %v730, 4294901760
        %1156 = vmatpush.msra.mxu0 %v1155
        %v1157 = vand.u32 %v729, 4294901760
        %1158 = vmatpush.msra.mxu0 %v1157
        %v1159 = vand.u32 %v728, 4294901760
        %1160 = vmatpush.msra.mxu0 %v1159
        %v1161 = vand.u32 %v724, 4294901760
        %1162 = vmatmul.f32.gmra.mxu0 %v1161
        %v1163 = vpop.f32.mrf.mxu0
        %v1164 = vadd.f32 %v1115, %v1163
        %v1165 = vand.u32 %v725, 4294901760
        %1166 = vmatmul.f32.gmra.mxu0 %v1165
        %v1167 = vpop.f32.mrf.mxu0
        %v1168 = vadd.f32 %v1119, %v1167
        %v1169 = vand.u32 %v726, 4294901760
        %1170 = vmatmul.f32.gmra.mxu0 %v1169
        %v1171 = vpop.f32.mrf.mxu0
        %v1172 = vadd.f32 %v1123, %v1171
        %v1173 = vand.u32 %v727, 4294901760
        %1174 = vmatmul.f32.gmra.mxu0 %v1173
        %v1175 = vpop.f32.mrf.mxu0
        %v1176 = vadd.f32 %v1127, %v1175
        %1177 = vdwg.mxu0
        %v1178 = vld [vmem:[%s260] sm:$0xff]
        %v1179 = vld [vmem:[%s260 + $0x8] sm:$0xff]
        %v1180 = vld [vmem:[%s260 + $0x10] sm:$0xff]
        %v1181 = vld [vmem:[%s260 + $0x18] sm:$0xff]
        %v1182 = vadd.f32 %v1164, %v1178
        %v1183 = vadd.f32 %v1168, %v1179
        %v1184 = vadd.f32 %v1172, %v1180
        %v1185 = vadd.f32 %v1176, %v1181
        %vm1186 = vcmask 7168
        %v1187 = vsel %vm1186, %v1182, -inf
        %v1188 = vsel %vm1186, %v1183, -inf
        %v1189 = vmax.f32 %v1187, %v1188
        %v1190 = vrot.slane %v1189, 4
        %v1191 = vmax.f32 %v1189, %v1190
        %v1192 = vrot.slane %v1191, 2
        %v1193 = vmax.f32 %v1191, %v1192
        %v1194 = vrot.slane %v1193, 1
        %v1195 = vmax.f32 %v1193, %v1194
        %v1196 = vsel %vm1186, %v1184, -inf
        %v1197 = vsel %vm1186, %v1185, -inf
        %v1198 = vmax.f32 %v1196, %v1197
        %v1199 = vrot.slane %v1198, 4
        %v1200 = vmax.f32 %v1198, %v1199
        %v1201 = vrot.slane %v1200, 2
        %v1202 = vmax.f32 %v1200, %v1201
        %v1203 = vrot.slane %v1202, 1
        %v1204 = vmax.f32 %v1202, %v1203
        %v1205 = vsub.f32 %v1182, %v1195
        %v1206 = vsub.f32 %v1183, %v1195
        %v1207 = vsub.f32 %v1184, %v1204
        %v1208 = vsub.f32 %v1185, %v1204
        %v1209 = vmul.f32 %v1205, 1.442695
        %v1210 = vpow.pop %v1209
        %v1211 = vmul.f32 %v1206, 1.442695
        %v1212 = vpow.pop %v1211
        %v1213 = vmul.f32 %v1207, 1.442695
        %v1214 = vpow.pop %v1213
        %v1215 = vmul.f32 %v1208, 1.442695
        %v1216 = vpow.pop %v1215
        %v1217 = vsel %vm1186, %v1210, 0.0
        %v1218 = vsel %vm1186, %v1212, 0.0
        %v1219 = vadd.f32 %v1217, %v1218
        %v1220 = vrot.slane %v1219, 4
        %v1221 = vadd.f32 %v1219, %v1220
        %v1222 = vrot.slane %v1221, 2
        %v1223 = vadd.f32 %v1221, %v1222
        %v1224 = vrot.slane %v1223, 1
        %v1225 = vadd.f32 %v1223, %v1224
        %v1226 = vsel %vm1186, %v1214, 0.0
        %v1227 = vsel %vm1186, %v1216, 0.0
        %v1228 = vadd.f32 %v1226, %v1227
        %v1229 = vrot.slane %v1228, 4
        %v1230 = vadd.f32 %v1228, %v1229
        %v1231 = vrot.slane %v1230, 2
        %v1232 = vadd.f32 %v1230, %v1231
        %v1233 = vrot.slane %v1232, 1
        %v1234 = vadd.f32 %v1232, %v1233
        %v1235 = vrcp.pop %v1225
        %v1236 = vmul.f32 %v1225, %v1235
        %v1237 = vsub.f32 1.0, %v1236
        %v1238 = vmul.f32 %v1235, %v1237
        %v1239 = vadd.f32 %v1235, %v1238
        %vm1240 = vweird.f32 %v1225
        %vm1241 = vweird.f32 %v1235
        %vm1242 = vmor %vm1240, %vm1241
        %v1243 = vsel %vm1242, %v1235, %v1239
        %v1244 = vand.u32 2147483647, %v1225
        %vm1245 = vcmp.eq.f32.partialorder %v1244, 8.507059e+37
        %v1246 = vand.u32 %v1225, 2147483648
        %v1247 = vor.u32 1.1754944e-38, %v1246
        %v1248 = vsel %vm1245, %v1247, %v1243
        %v1249 = vrcp.pop %v1234
        %v1250 = vmul.f32 %v1234, %v1249
        %v1251 = vsub.f32 1.0, %v1250
        %v1252 = vmul.f32 %v1249, %v1251
        %v1253 = vadd.f32 %v1249, %v1252
        %vm1254 = vweird.f32 %v1234
        %vm1255 = vweird.f32 %v1249
        %vm1256 = vmor %vm1254, %vm1255
        %v1257 = vsel %vm1256, %v1249, %v1253
        %v1258 = vand.u32 2147483647, %v1234
        %vm1259 = vcmp.eq.f32.partialorder %v1258, 8.507059e+37
        %v1260 = vand.u32 %v1234, 2147483648
        %v1261 = vor.u32 1.1754944e-38, %v1260
        %v1262 = vsel %vm1259, %v1261, %v1257
        %v1263 = vmul.f32 %v1210, %v1248
        %v1264 = vmul.f32 %v1212, %v1248
        %v1265 = vmul.f32 %v1214, %v1262
        %v1266 = vmul.f32 %v1216, %v1262
        %1268 = vset.pattern.permute.xlu0 0
        %1269 = vperm.xlu0 %1268, %v1263
        %v1270 = vpop.permute.xlu0 %1269
        %1273 = vset.pattern.permute.xlu0 0
        %1274 = vperm.xlu0 %1273, %v1264
        %v1275 = vpop.permute.xlu0 %1274
        %1278 = vset.pattern.permute.xlu0 0
        %1279 = vperm.xlu0 %1278, %v1265
        %v1280 = vpop.permute.xlu0 %1279
        %1283 = vset.pattern.permute.xlu0 0
        %1284 = vperm.xlu0 %1283, %v1266
        %v1285 = vpop.permute.xlu0 %1284
        %v1287 = vmul.f32 %v1270, %v270
        %v1288 = vmul.f32 %v1275, %v271
        %v1289 = vmul.f32 %v1280, %v272
        %v1290 = vmul.f32 %v1285, %v273
        %v1291 = vadd.f32 %v1287, %v1288
        %v1292 = vrot.slane %v1291, 4
        %v1293 = vadd.f32 %v1291, %v1292
        %v1294 = vrot.slane %v1293, 2
        %v1295 = vadd.f32 %v1293, %v1294
        %v1296 = vrot.slane %v1295, 1
        %v1297 = vadd.f32 %v1295, %v1296
        %v1298 = vadd.f32 %v1289, %v1290
        %v1299 = vrot.slane %v1298, 4
        %v1300 = vadd.f32 %v1298, %v1299
        %v1301 = vrot.slane %v1300, 2
        %v1302 = vadd.f32 %v1300, %v1301
        %v1303 = vrot.slane %v1302, 1
        %v1304 = vadd.f32 %v1302, %v1303
        %1305 = vst [vmem:[%s239] sm:$0x1] %v1297
        %1306 = vst [vmem:[%s239 + $0x1] sm:$0x1] %v1304
        %1307 = vst.msk [vmem:[%s268] sm:$0xff] %vm1186, %v1263
        %1308 = vst.msk [vmem:[%s268 + $0x8] sm:$0xff] %vm1186, %v1264
        %1309 = vst.msk [vmem:[%s268 + $0x10] sm:$0xff] %vm1186, %v1265
        %1310 = vst.msk [vmem:[%s268 + $0x18] sm:$0xff] %vm1186, %v1266
        %s1311 = sand.u32 %s122, 1
        %s1312 = scalar_lea.sflag [#allocation3], %s1311
        %s1313 = sand.u32 %s122, 1
        %s1314 = smul.addr %s1313, 2
        %s1315 = scalar_lea.vmem [#allocation2], %s1314
        %s1316 = smul.u32 2, %s20
        %p1317 = scmp.lt.s32.totalorder %s1316, 3
        %s1318 = scalar_select %p1317, %s1316, 3
        %s1319 = smul.addr %s1318, 2
        %s1320 = smul.addr %s1319, 8
        %s1321 = scalar_lea.vmem %s5, %s1320
        // Predicated region
        $region37: #{tpu_custom_call.1} parent=35 // pred_check
          %p1322 = pneg %p132
        $region38: #{tpu_custom_call.1} parent=35 // pred_check_branch
          %1324 = sbr.rel (%p1322) target = $region40
        $region39: #{tpu_custom_call.1} parent=35 // pred_region
          %s1325 = smul.u32 2, %s20
          %1327 = vsyncadd %s1312, 0
          %s1328 = scalar_lea.hbm %s4, %s1325
          %s1329 = sshll.u32 %s1315, 4
          %s1330 = int_to_ptr.vmem [resolvable:$true] %s1329
          %s1331 = sshll.u32 %s1328, 4
          %s1332 = int_to_ptr.hbm [resolvable:$true] %s1331
          %1337 = dma.vmem_to_hbm [thread:$0]  %s1330, 32, %s1332, %s1312, 16, 16, 1
        $region40: #{tpu_custom_call.1} parent=35 // pred_fallthru
          _
        // Predicated region
        $region41: #{tpu_custom_call.1} parent=35 // pred_check
          %p1338 = pneg %p158
        $region42: #{tpu_custom_call.1} parent=35 // pred_check_branch
          %1340 = sbr.rel (%p1338) target = $region44
        $region43: #{tpu_custom_call.1} parent=35 // pred_region
          %s1341 = smul.u32 2, %s20
        $region44: #{tpu_custom_call.1} parent=35 // pred_fallthru
          _
      $region36: #{tpu_custom_call.1} parent=5 // pred_fallthru
        _
      %p1342 = scmp.le.s32.totalorder 2, %s15
      // Predicated region
      $region45: #{tpu_custom_call.1} parent=5 // pred_check
        %p1343 = pneg %p1342
      $region46: #{tpu_custom_call.1} parent=5 // pred_check_branch
        %1345 = sbr.rel (%p1343) target = $region48
      $region47: #{tpu_custom_call.1} parent=5 // pred_region
        %s1346 = ssub.s32 %s15, 2
        // Predicated region
        $region49: #{tpu_custom_call.1} parent=47 // pred_check
          %p1347 = pneg %p138
        $region50: #{tpu_custom_call.1} parent=47 // pred_check_branch
          %1349 = sbr.rel (%p1347) target = $region52
        $region51: #{tpu_custom_call.1} parent=47 // pred_region
          %s1350 = sand.u32 %s123, 1
          %s1351 = scalar_lea.sflag [#allocation3], %s1350
          %s1352 = sand.u32 %s123, 1
          %s1353 = smul.addr %s1352, 2
          %s1354 = scalar_lea.vmem [#allocation2], %s1353
          %1356 = dma.done %s1351, 32
        $region52: #{tpu_custom_call.1} parent=47 // pred_fallthru
          _
        // Predicated region
        $region53: #{tpu_custom_call.1} parent=47 // pred_check
          %p1357 = pneg %p164
        $region54: #{tpu_custom_call.1} parent=47 // pred_check_branch
          %1359 = sbr.rel (%p1357) target = $region56
        $region55: #{tpu_custom_call.1} parent=47 // pred_region
          %s1360 = smul.u32 2, %s21
          %p1361 = scmp.lt.s32.totalorder %s1360, 3
          %s1362 = scalar_select %p1361, %s1360, 3
          %s1363 = smul.addr %s1362, 2
          %s1364 = smul.addr %s1363, 8
          %s1365 = scalar_lea.vmem %s5, %s1364
        $region56: #{tpu_custom_call.1} parent=47 // pred_fallthru
          _
      $region48: #{tpu_custom_call.1} parent=5 // pred_fallthru
        _
    $region6: #{tpu_custom_call.1} parent=1 // loop_footer
      %s19 = sadd.s32 1, %s15
    $region7: #{tpu_custom_call.1} parent=1 // loop_footer_branch
      %14 = sbr.rel target = $region3
    $region8: #{tpu_custom_call.1} parent=1 // loop_exit
      _
    %1366 = vsyncpa [#allocation3], 1
    %s1367 = scalar_lea.sflag [#allocation3], 1
    %1368 = vsyncpa %s1367, 1

</llo_original>
